<compile_context>
chip_gen: v7x
topology: tpu7x:2x2x1
jax: 0.10.0
libtpu: 0.0.40
codegen_flags: <defaults>
</compile_context>

<pallas_src>
import jax
import jax.numpy as jnp
from jax.experimental import pallas as pl
from jax.experimental.pallas import tpu as pltpu

IN_FEATURES = 12
OUT_FEATURES = 1
LEAKY_SLOPE = 0.01                            # nn.LeakyReLU default negative_slope
ROWS_PER_CHUNK = 128                          # rows packed per lane-dense chunk row
CHUNK_LANES = ROWS_PER_CHUNK * IN_FEATURES    # 1536 = 12 * 128 lanes
PAD_ROWS = ROWS_PER_CHUNK * 8                 # 1024: keeps chunked sublane dim %8 == 0


def _round_up(x, m):
    return (x + m - 1) // m * m


def slm_head_kernel(x_ref, w_ref, b_ref, o_ref):
    """One row-tile of the head: sigmoid(leaky_relu(x @ w + b)).

    x_ref: (tile_chunks, 1536) VMEM  -- 128 logits-rows packed per chunk row
    w_ref: (1536, 128)         VMEM  -- block-diagonal kron(I_128, w) weight (resident)
    b_ref: (1,)                SMEM  -- Linear bias (scalar)
    o_ref: (tile_chunks, 128)  VMEM  -- one sigmoid output per original row (lane-dense)
    """
    # MXU does the per-row 12-feature reduction; f32 accumulation.
    y = jnp.dot(x_ref[...], w_ref[...], preferred_element_type=jnp.float32) + b_ref[0]
    # LeakyReLU
    y = jnp.where(y >= 0, y, LEAKY_SLOPE * y)
    # Numerically stable sigmoid: one EUP reciprocal + one multiply (no divides).
    e = jnp.exp(-jnp.abs(y))
    r = pl.reciprocal(1.0 + e, approx=True)
    o_ref[...] = jnp.where(y >= 0, r, e * r).astype(o_ref.dtype)


def slm_forward(logits, weight, bias, *, tile_rows=65536, out_dtype=jnp.float32):
    """logits: [B, S, 12] (f32 or bf16); weight: [1, 12]; bias: [1] -> [B, S, 1]."""
    B, S, F = logits.shape
    assert F == IN_FEATURES
    N = B * S

    # Pad only to the 1024-row granularity (free when already aligned).
    n_pad = _round_up(N, PAD_ROWS)
    num_chunks = n_pad // ROWS_PER_CHUNK              # multiple of 8

    # Tile selection: big (~3 MB f32) input blocks to amortize per-step
    # pipeline overhead; never larger than the problem; prefer >=2 grid steps
    # so v7x megacore can shard the row tiles across both TensorCores.
    tile_rows = max(PAD_ROWS, _round_up(int(tile_rows), PAD_ROWS))
    tile_rows = min(tile_rows, n_pad)
    if n_pad >= 2 * PAD_ROWS:
        tile_rows = min(tile_rows, _round_up(n_pad // 2, PAD_ROWS))
    tile_chunks = tile_rows // ROWS_PER_CHUNK         # multiple of 8
    num_tiles = pl.cdiv(num_chunks, tile_chunks)

    x2d = logits.reshape(N, F)
    if n_pad != N:                                    # worst-case pad: 1023 rows (~48 KB)
        x2d = jnp.pad(x2d, ((0, n_pad - N), (0, 0)))
    xf = x2d.reshape(num_chunks, CHUNK_LANES)         # free reshape (row-major)

    # Keep bf16 end-to-end into the MXU when the producer emits bf16.
    if logits.dtype == jnp.bfloat16:
        compute_dtype = jnp.bfloat16
    else:
        compute_dtype = jnp.float32
        if xf.dtype != jnp.float32:
            xf = xf.astype(jnp.float32)

    # Block-diagonal weight: column j holds w in rows [12j, 12j+12).
    w_col = weight.reshape(OUT_FEATURES, IN_FEATURES).astype(jnp.float32).T   # (12, 1)
    w_blk = jnp.kron(jnp.eye(ROWS_PER_CHUNK, dtype=jnp.float32), w_col)       # (1536, 128)
    w_blk = w_blk.astype(compute_dtype)
    b_s = bias.reshape(1).astype(jnp.float32)

    out = pl.pallas_call(
        slm_head_kernel,
        out_shape=jax.ShapeDtypeStruct((num_chunks, ROWS_PER_CHUNK), out_dtype),
        grid=(num_tiles,),
        in_specs=[
            pl.BlockSpec((tile_chunks, CHUNK_LANES), lambda i: (i, 0)),   # logits tile
            pl.BlockSpec((CHUNK_LANES, ROWS_PER_CHUNK), lambda i: (0, 0)),  # weight (resident)
            pl.BlockSpec(memory_space=pltpu.MemorySpace.SMEM),            # bias scalar
        ],
        out_specs=pl.BlockSpec((tile_chunks, ROWS_PER_CHUNK), lambda i: (i, 0)),
        compiler_params=pltpu.CompilerParams(
            dimension_semantics=("parallel",),
        ),
    )(xf, w_blk, b_s)

    # Row-major (num_chunks, 128) == flat row order; drop padding, restore [B, S, 1].
    return out.reshape(-1)[:N].reshape(B, S, OUT_FEATURES)


def reference_forward(logits, weight, bias):
    y = jnp.einsum("bsf,of->bso", logits.astype(jnp.float32), weight) + bias[None, None, :]
    y = jnp.where(y >= 0, y, LEAKY_SLOPE * y)
    return jax.nn.sigmoid(y)


if __name__ == "__main__":
    key = jax.random.PRNGKey(0)
    k_x, k_w, k_b = jax.random.split(key, 3)

    B, S = 2, 8   # small demo shapes; N = 16 logits rows
    logits = jax.random.normal(k_x, (B, S, IN_FEATURES), dtype=jnp.float32)

    # Deterministic Linear(12, 1) init (matches PyTorch's U(-1/sqrt(12), 1/sqrt(12)) range)
    bound = 1.0 / jnp.sqrt(jnp.float32(IN_FEATURES))
    weight = jax.random.uniform(
        k_w, (OUT_FEATURES, IN_FEATURES), minval=-bound, maxval=bound, dtype=jnp.float32)
    bias = jax.random.uniform(
        k_b, (OUT_FEATURES,), minval=-bound, maxval=bound, dtype=jnp.float32)

    out = slm_forward(logits, weight, bias)
    out = jax.block_until_ready(out)

    ref = reference_forward(logits, weight, bias)
    assert out.shape == (B, S, OUT_FEATURES)
    # Tolerance loosened slightly for the EUP approximate reciprocal in the epilogue.
    assert jnp.allclose(out, ref, atol=2e-3, rtol=2e-3), "mismatch vs reference"

    print("KERNEL_OK")
</pallas_src>

<mosaic_0001>
module attributes {stable_mosaic.version = 11 : i64} {
  func.func @slm_head_kernel(%arg0: i32, %arg1: memref<8x1536xf32, #tpu.memory_space<vmem>>, %arg2: memref<1536x128xf32, #tpu.memory_space<vmem>>, %arg3: memref<1xf32, #tpu.memory_space<smem>>, %arg4: memref<8x128xf32, #tpu.memory_space<vmem>>) attributes {dimension_semantics = [#tpu.dimension_semantics<parallel>], iteration_bounds = array<i64: 1>, scalar_prefetch = 0 : i64, scratch_operands = 0 : i64, tpu.core_type = #tpu.core_type<tc>, window_params = [{transform_indices = @transform_0, window_bounds = array<i64: 8, 1536>}, {pipeline_mode = #tpu.pipeline_mode<synchronous>, transform_indices = @transform_1, window_bounds = array<i64: 1536, 128>}, {transform_indices = @transform_2, window_bounds = array<i64: 1>}, {transform_indices = @transform_3, window_bounds = array<i64: 8, 128>}]} {
    %c0 = arith.constant 0 : index
    %c0_0 = arith.constant 0 : index
    %0 = vector.load %arg1[%c0, %c0_0] : memref<8x1536xf32, #tpu.memory_space<vmem>>, vector<8x1536xf32>
    %c0_1 = arith.constant 0 : index
    %c0_2 = arith.constant 0 : index
    %1 = vector.load %arg2[%c0_1, %c0_2] : memref<1536x128xf32, #tpu.memory_space<vmem>>, vector<1536x128xf32>
    %cst = arith.constant dense<0.000000e+00> : vector<8x128xf32>
    %2 = tpu.matmul %0, %1, %cst {dimension_numbers = #tpu.dot_dimension_numbers<[1], [0], [0], [1], [0, 0, 1, 1], [], []>} : vector<8x1536xf32>, vector<1536x128xf32>, vector<8x128xf32> -> vector<8x128xf32>
    %c0_3 = arith.constant 0 : index
    %3 = memref.load %arg3[%c0_3] : memref<1xf32, #tpu.memory_space<smem>>
    %4 = vector.broadcast %3 : f32 to vector<8x128xf32>
    %5 = arith.addf %2, %4 : vector<8x128xf32>
    %cst_4 = arith.constant 0.000000e+00 : f32
    %6 = vector.broadcast %cst_4 : f32 to vector<8x128xf32>
    %7 = arith.cmpf oge, %5, %6 : vector<8x128xf32>
    %cst_5 = arith.constant 0.00999999977 : f32
    %8 = vector.broadcast %cst_5 : f32 to vector<8x128xf32>
    %9 = arith.mulf %8, %5 : vector<8x128xf32>
    %10 = arith.select %7, %5, %9 : vector<8x128xi1>, vector<8x128xf32>
    %11 = math.absf %10 : vector<8x128xf32>
    %cst_6 = arith.constant 0.000000e+00 : f32
    %12 = vector.broadcast %cst_6 : f32 to vector<8x128xf32>
    %13 = arith.subf %12, %11 : vector<8x128xf32>
    %14 = math.exp %13 : vector<8x128xf32>
    %cst_7 = arith.constant 1.000000e+00 : f32
    %15 = vector.broadcast %cst_7 : f32 to vector<8x128xf32>
    %16 = arith.addf %15, %14 : vector<8x128xf32>
    %17 = tpu.reciprocal %16 {approx = true} : vector<8x128xf32> -> vector<8x128xf32>
    %cst_8 = arith.constant 0.000000e+00 : f32
    %18 = vector.broadcast %cst_8 : f32 to vector<8x128xf32>
    %19 = arith.cmpf oge, %10, %18 : vector<8x128xf32>
    %20 = arith.mulf %14, %17 : vector<8x128xf32>
    %21 = arith.select %19, %17, %20 : vector<8x128xi1>, vector<8x128xf32>
    %c0_9 = arith.constant 0 : index
    %c0_10 = arith.constant 0 : index
    %22 = vector.load %arg4[%c0_9, %c0_10] : memref<8x128xf32, #tpu.memory_space<vmem>>, vector<8x128xf32>
    tpu.vector_store %arg4[%c0_9, %c0_10], %21 {strides = array<i32>} : memref<8x128xf32, #tpu.memory_space<vmem>>, vector<8x128xf32>,
    return
  }
  func.func @transform_0(%arg0: i32) -> (i32, i32) {
    %c0_i32 = arith.constant 0 : i32
    %c0_i32_0 = arith.constant 0 : i32
    return %arg0, %c0_i32 : i32, i32
  }
  func.func @transform_1(%arg0: i32) -> (i32, i32) {
    %c0_i32 = arith.constant 0 : i32
    %c0_i32_0 = arith.constant 0 : i32
    %c0_i32_1 = arith.constant 0 : i32
    return %c0_i32, %c0_i32_0 : i32, i32
  }
  func.func @transform_2(%arg0: i32) -> i32 {
    %c0_i32 = arith.constant 0 : i32
    %c0_i32_0 = arith.constant 0 : i32
    return %c0_i32 : i32
  }
  func.func @transform_3(%arg0: i32) -> (i32, i32) {
    %c0_i32 = arith.constant 0 : i32
    %c0_i32_0 = arith.constant 0 : i32
    return %arg0, %c0_i32 : i32, i32
  }
}

</mosaic_0001>

<llo_original>
// kernel: tpu_custom_call.1
$region0: #{tpu_custom_call.1}
  #allocation0 [shape = 'u32[]', space=smem, size = 0x4, offset = 0x4, fixed_abs, tag = 'smem constant byte address 0x4 - core index']
  #allocation1 [shape = 'u32[144,128]{1,0:T(1,128)}', space=vmem, size = 0x12000, scoped, tag = 'internal scratch']
  #allocation2 [shape = 'f32[1]{0:T(128)S(6)}', space=smem, size = 0x200, scoped, tag = 'scoped memory for tpu_custom_call.1']
  %s0 = inlined_call_operand.hbm [shape: f32[8,1536], index: 0, kind: input, shape index: {}]
  %s1 = inlined_call_operand.hbm [shape: f32[1536,128], index: 1, kind: input, shape index: {}]
  %s2 = inlined_call_operand.<no memory space> [shape: f32[1], index: 2, kind: input, shape index: {}]
  %s3 = inlined_call_operand.hbm [shape: f32[8,128], index: 3, kind: output, shape index: {}]
  %s4 = sld [smem:[#allocation0]]
  $region30: #{tpu_custom_call.1} parent=0
    _
  %s6 = ssub.s32 1, %s4
  %s7 = scalar_select 0, %s6, %s4
  %8 = sst [smem:[#allocation2]] %s2
  $region1: #{tpu_custom_call.1} parent=0
    #allocation3 [shape = 'u8[49152]{0}', space=vmem, size = 0xc000, scoped, tag = 'input window, operand 0, single buffered']
    #allocation4 [shape = 's32[1]{0}', space=sflag, size = 0x4, scoped, tag = 'scoped memory for tpu_custom_call.1']
    #allocation5 [shape = 's32[1]{0}', space=sflag, size = 0x4, scoped, tag = 'scoped memory for tpu_custom_call.1']
    #allocation6 [shape = 'u8[786432]{0}', space=vmem, size = 0xc0000, scoped, tag = 'input window, operand 1, single buffered']
    #allocation7 [shape = 's32[1]{0}', space=sflag, size = 0x4, scoped, tag = 'scoped memory for tpu_custom_call.1']
    #allocation8 [shape = 'u8[4096]{0}', space=vmem, size = 0x1000, scoped, tag = 'output window, operand 0, single buffered']
    %9 = vsyncpa [#allocation4], 0
    %10 = vsyncpa [#allocation7], 0
    %11 = vsyncpa [#allocation5], 0
    // Predicated region
    $region2: #{tpu_custom_call.1} parent=1 // pred_check
      _
    $region3: #{tpu_custom_call.1} parent=1 // pred_check_branch
      %13 = sbr.rel (0) target = $region5
    $region4: #{tpu_custom_call.1} parent=1 // pred_region
      %s15 = ssub.s32 1536, 1536
      %16 = vsyncadd [#allocation4], %s15
      %s18 = sshll.u32 [#allocation3], 4
      %s19 = int_to_ptr.vmem [resolvable:$true] %s18
      %21 = dma.hbm_to_vmem [thread:$0]  %s0, 1536, %s19, [#allocation4]
    $region5: #{tpu_custom_call.1} parent=1 // pred_fallthru
      _
    // Predicated region
    $region6: #{tpu_custom_call.1} parent=1 // pred_check
      _
    $region7: #{tpu_custom_call.1} parent=1 // pred_check_branch
      %23 = sbr.rel (0) target = $region9
    $region8: #{tpu_custom_call.1} parent=1 // pred_region
      %s25 = ssub.s32 24576, 24576
      %26 = vsyncadd [#allocation7], %s25
      %s27 = sshll.u32 [#allocation6], 4
      %s28 = int_to_ptr.vmem [resolvable:$true] %s27
      %33 = dma.hbm_to_vmem [thread:$0]  %s1, 24576, %s28, [#allocation7], 128, 128, 8
    $region9: #{tpu_custom_call.1} parent=1 // pred_fallthru
      _
    // Predicated region
    $region10: #{tpu_custom_call.1} parent=1 // pred_check
      _
    $region11: #{tpu_custom_call.1} parent=1 // pred_check_branch
      %35 = sbr.rel (0) target = $region13
    $region12: #{tpu_custom_call.1} parent=1 // pred_region
      _
    $region13: #{tpu_custom_call.1} parent=1 // pred_fallthru
      _
    // Predicated region
    $region14: #{tpu_custom_call.1} parent=1 // pred_check
      _
    $region15: #{tpu_custom_call.1} parent=1 // pred_check_branch
      %37 = sbr.rel (0) target = $region17
    $region16: #{tpu_custom_call.1} parent=1 // pred_region
      %38 = dma.done [#allocation4], 1536
    $region17: #{tpu_custom_call.1} parent=1 // pred_fallthru
      _
    // Predicated region
    $region18: #{tpu_custom_call.1} parent=1 // pred_check
      _
    $region19: #{tpu_custom_call.1} parent=1 // pred_check_branch
      %40 = sbr.rel (0) target = $region21
    $region20: #{tpu_custom_call.1} parent=1 // pred_region
      %41 = dma.done [#allocation7], 24576
    $region21: #{tpu_custom_call.1} parent=1 // pred_fallthru
      _
    %v42 = vld [vmem:[#allocation3] sm:$0xff]
    %v43 = vld [vmem:[#allocation3 + $0x8] sm:$0xff]
    %v44 = vld [vmem:[#allocation3 + $0x10] sm:$0xff]
    %v45 = vld [vmem:[#allocation3 + $0x18] sm:$0xff]
    %v46 = vld [vmem:[#allocation3 + $0x20] sm:$0xff]
    %v47 = vld [vmem:[#allocation3 + $0x28] sm:$0xff]
    %v48 = vld [vmem:[#allocation3 + $0x30] sm:$0xff]
    %v49 = vld [vmem:[#allocation3 + $0x38] sm:$0xff]
    %v50 = vld [vmem:[#allocation3 + $0x40] sm:$0xff]
    %v51 = vld [vmem:[#allocation3 + $0x48] sm:$0xff]
    %v52 = vld [vmem:[#allocation3 + $0x50] sm:$0xff]
    %v53 = vld [vmem:[#allocation3 + $0x58] sm:$0xff]
    %v54 = vld [vmem:[#allocation6] sm:$0xff]
    %v55 = vld [vmem:[#allocation6 + $0x8] sm:$0xff]
    %v56 = vld [vmem:[#allocation6 + $0x10] sm:$0xff]
    %v57 = vld [vmem:[#allocation6 + $0x18] sm:$0xff]
    %v58 = vld [vmem:[#allocation6 + $0x20] sm:$0xff]
    %v59 = vld [vmem:[#allocation6 + $0x28] sm:$0xff]
    %v60 = vld [vmem:[#allocation6 + $0x30] sm:$0xff]
    %v61 = vld [vmem:[#allocation6 + $0x38] sm:$0xff]
    %v62 = vld [vmem:[#allocation6 + $0x40] sm:$0xff]
    %v63 = vld [vmem:[#allocation6 + $0x48] sm:$0xff]
    %v64 = vld [vmem:[#allocation6 + $0x50] sm:$0xff]
    %v65 = vld [vmem:[#allocation6 + $0x58] sm:$0xff]
    %v66 = vld [vmem:[#allocation6 + $0x60] sm:$0xff]
    %v67 = vld [vmem:[#allocation6 + $0x68] sm:$0xff]
    %v68 = vld [vmem:[#allocation6 + $0x70] sm:$0xff]
    %v69 = vld [vmem:[#allocation6 + $0x78] sm:$0xff]
    %v70 = vld [vmem:[#allocation6 + $0x80] sm:$0xff]
    %v71 = vld [vmem:[#allocation6 + $0x88] sm:$0xff]
    %v72 = vld [vmem:[#allocation6 + $0x90] sm:$0xff]
    %v73 = vld [vmem:[#allocation6 + $0x98] sm:$0xff]
    %v74 = vld [vmem:[#allocation6 + $0xa0] sm:$0xff]
    %v75 = vld [vmem:[#allocation6 + $0xa8] sm:$0xff]
    %v76 = vld [vmem:[#allocation6 + $0xb0] sm:$0xff]
    %v77 = vld [vmem:[#allocation6 + $0xb8] sm:$0xff]
    %v78 = vld [vmem:[#allocation6 + $0xc0] sm:$0xff]
    %v79 = vld [vmem:[#allocation6 + $0xc8] sm:$0xff]
    %v80 = vld [vmem:[#allocation6 + $0xd0] sm:$0xff]
    %v81 = vld [vmem:[#allocation6 + $0xd8] sm:$0xff]
    %v82 = vld [vmem:[#allocation6 + $0xe0] sm:$0xff]
    %v83 = vld [vmem:[#allocation6 + $0xe8] sm:$0xff]
    %v84 = vld [vmem:[#allocation6 + $0xf0] sm:$0xff]
    %v85 = vld [vmem:[#allocation6 + $0xf8] sm:$0xff]
    %v86 = vld [vmem:[#allocation6 + $0x100] sm:$0xff]
    %v87 = vld [vmem:[#allocation6 + $0x108] sm:$0xff]
    %v88 = vld [vmem:[#allocation6 + $0x110] sm:$0xff]
    %v89 = vld [vmem:[#allocation6 + $0x118] sm:$0xff]
    %v90 = vld [vmem:[#allocation6 + $0x120] sm:$0xff]
    %v91 = vld [vmem:[#allocation6 + $0x128] sm:$0xff]
    %v92 = vld [vmem:[#allocation6 + $0x130] sm:$0xff]
    %v93 = vld [vmem:[#allocation6 + $0x138] sm:$0xff]
    %v94 = vld [vmem:[#allocation6 + $0x140] sm:$0xff]
    %v95 = vld [vmem:[#allocation6 + $0x148] sm:$0xff]
    %v96 = vld [vmem:[#allocation6 + $0x150] sm:$0xff]
    %v97 = vld [vmem:[#allocation6 + $0x158] sm:$0xff]
    %v98 = vld [vmem:[#allocation6 + $0x160] sm:$0xff]
    %v99 = vld [vmem:[#allocation6 + $0x168] sm:$0xff]
    %v100 = vld [vmem:[#allocation6 + $0x170] sm:$0xff]
    %v101 = vld [vmem:[#allocation6 + $0x178] sm:$0xff]
    %v102 = vld [vmem:[#allocation6 + $0x180] sm:$0xff]
    %v103 = vld [vmem:[#allocation6 + $0x188] sm:$0xff]
    %v104 = vld [vmem:[#allocation6 + $0x190] sm:$0xff]
    %v105 = vld [vmem:[#allocation6 + $0x198] sm:$0xff]
    %v106 = vld [vmem:[#allocation6 + $0x1a0] sm:$0xff]
    %v107 = vld [vmem:[#allocation6 + $0x1a8] sm:$0xff]
    %v108 = vld [vmem:[#allocation6 + $0x1b0] sm:$0xff]
    %v109 = vld [vmem:[#allocation6 + $0x1b8] sm:$0xff]
    %v110 = vld [vmem:[#allocation6 + $0x1c0] sm:$0xff]
    %v111 = vld [vmem:[#allocation6 + $0x1c8] sm:$0xff]
    %v112 = vld [vmem:[#allocation6 + $0x1d0] sm:$0xff]
    %v113 = vld [vmem:[#allocation6 + $0x1d8] sm:$0xff]
    %v114 = vld [vmem:[#allocation6 + $0x1e0] sm:$0xff]
    %v115 = vld [vmem:[#allocation6 + $0x1e8] sm:$0xff]
    %v116 = vld [vmem:[#allocation6 + $0x1f0] sm:$0xff]
    %v117 = vld [vmem:[#allocation6 + $0x1f8] sm:$0xff]
    %v118 = vld [vmem:[#allocation6 + $0x200] sm:$0xff]
    %v119 = vld [vmem:[#allocation6 + $0x208] sm:$0xff]
    %v120 = vld [vmem:[#allocation6 + $0x210] sm:$0xff]
    %v121 = vld [vmem:[#allocation6 + $0x218] sm:$0xff]
    %v122 = vld [vmem:[#allocation6 + $0x220] sm:$0xff]
    %v123 = vld [vmem:[#allocation6 + $0x228] sm:$0xff]
    %v124 = vld [vmem:[#allocation6 + $0x230] sm:$0xff]
    %v125 = vld [vmem:[#allocation6 + $0x238] sm:$0xff]
    %v126 = vld [vmem:[#allocation6 + $0x240] sm:$0xff]
    %v127 = vld [vmem:[#allocation6 + $0x248] sm:$0xff]
    %v128 = vld [vmem:[#allocation6 + $0x250] sm:$0xff]
    %v129 = vld [vmem:[#allocation6 + $0x258] sm:$0xff]
    %v130 = vld [vmem:[#allocation6 + $0x260] sm:$0xff]
    %v131 = vld [vmem:[#allocation6 + $0x268] sm:$0xff]
    %v132 = vld [vmem:[#allocation6 + $0x270] sm:$0xff]
    %v133 = vld [vmem:[#allocation6 + $0x278] sm:$0xff]
    %v134 = vld [vmem:[#allocation6 + $0x280] sm:$0xff]
    %v135 = vld [vmem:[#allocation6 + $0x288] sm:$0xff]
    %v136 = vld [vmem:[#allocation6 + $0x290] sm:$0xff]
    %v137 = vld [vmem:[#allocation6 + $0x298] sm:$0xff]
    %v138 = vld [vmem:[#allocation6 + $0x2a0] sm:$0xff]
    %v139 = vld [vmem:[#allocation6 + $0x2a8] sm:$0xff]
    %v140 = vld [vmem:[#allocation6 + $0x2b0] sm:$0xff]
    %v141 = vld [vmem:[#allocation6 + $0x2b8] sm:$0xff]
    %v142 = vld [vmem:[#allocation6 + $0x2c0] sm:$0xff]
    %v143 = vld [vmem:[#allocation6 + $0x2c8] sm:$0xff]
    %v144 = vld [vmem:[#allocation6 + $0x2d0] sm:$0xff]
    %v145 = vld [vmem:[#allocation6 + $0x2d8] sm:$0xff]
    %v146 = vld [vmem:[#allocation6 + $0x2e0] sm:$0xff]
    %v147 = vld [vmem:[#allocation6 + $0x2e8] sm:$0xff]
    %v148 = vld [vmem:[#allocation6 + $0x2f0] sm:$0xff]
    %v149 = vld [vmem:[#allocation6 + $0x2f8] sm:$0xff]
    %v150 = vld [vmem:[#allocation6 + $0x300] sm:$0xff]
    %v151 = vld [vmem:[#allocation6 + $0x308] sm:$0xff]
    %v152 = vld [vmem:[#allocation6 + $0x310] sm:$0xff]
    %v153 = vld [vmem:[#allocation6 + $0x318] sm:$0xff]
    %v154 = vld [vmem:[#allocation6 + $0x320] sm:$0xff]
    %v155 = vld [vmem:[#allocation6 + $0x328] sm:$0xff]
    %v156 = vld [vmem:[#allocation6 + $0x330] sm:$0xff]
    %v157 = vld [vmem:[#allocation6 + $0x338] sm:$0xff]
    %v158 = vld [vmem:[#allocation6 + $0x340] sm:$0xff]
    %v159 = vld [vmem:[#allocation6 + $0x348] sm:$0xff]
    %v160 = vld [vmem:[#allocation6 + $0x350] sm:$0xff]
    %v161 = vld [vmem:[#allocation6 + $0x358] sm:$0xff]
    %v162 = vld [vmem:[#allocation6 + $0x360] sm:$0xff]
    %v163 = vld [vmem:[#allocation6 + $0x368] sm:$0xff]
    %v164 = vld [vmem:[#allocation6 + $0x370] sm:$0xff]
    %v165 = vld [vmem:[#allocation6 + $0x378] sm:$0xff]
    %v166 = vld [vmem:[#allocation6 + $0x380] sm:$0xff]
    %v167 = vld [vmem:[#allocation6 + $0x388] sm:$0xff]
    %v168 = vld [vmem:[#allocation6 + $0x390] sm:$0xff]
    %v169 = vld [vmem:[#allocation6 + $0x398] sm:$0xff]
    %v170 = vld [vmem:[#allocation6 + $0x3a0] sm:$0xff]
    %v171 = vld [vmem:[#allocation6 + $0x3a8] sm:$0xff]
    %v172 = vld [vmem:[#allocation6 + $0x3b0] sm:$0xff]
    %v173 = vld [vmem:[#allocation6 + $0x3b8] sm:$0xff]
    %v174 = vld [vmem:[#allocation6 + $0x3c0] sm:$0xff]
    %v175 = vld [vmem:[#allocation6 + $0x3c8] sm:$0xff]
    %v176 = vld [vmem:[#allocation6 + $0x3d0] sm:$0xff]
    %v177 = vld [vmem:[#allocation6 + $0x3d8] sm:$0xff]
    %v178 = vld [vmem:[#allocation6 + $0x3e0] sm:$0xff]
    %v179 = vld [vmem:[#allocation6 + $0x3e8] sm:$0xff]
    %v180 = vld [vmem:[#allocation6 + $0x3f0] sm:$0xff]
    %v181 = vld [vmem:[#allocation6 + $0x3f8] sm:$0xff]
    %v182 = vld [vmem:[#allocation6 + $0x400] sm:$0xff]
    %v183 = vld [vmem:[#allocation6 + $0x408] sm:$0xff]
    %v184 = vld [vmem:[#allocation6 + $0x410] sm:$0xff]
    %v185 = vld [vmem:[#allocation6 + $0x418] sm:$0xff]
    %v186 = vld [vmem:[#allocation6 + $0x420] sm:$0xff]
    %v187 = vld [vmem:[#allocation6 + $0x428] sm:$0xff]
    %v188 = vld [vmem:[#allocation6 + $0x430] sm:$0xff]
    %v189 = vld [vmem:[#allocation6 + $0x438] sm:$0xff]
    %v190 = vld [vmem:[#allocation6 + $0x440] sm:$0xff]
    %v191 = vld [vmem:[#allocation6 + $0x448] sm:$0xff]
    %v192 = vld [vmem:[#allocation6 + $0x450] sm:$0xff]
    %v193 = vld [vmem:[#allocation6 + $0x458] sm:$0xff]
    %v194 = vld [vmem:[#allocation6 + $0x460] sm:$0xff]
    %v195 = vld [vmem:[#allocation6 + $0x468] sm:$0xff]
    %v196 = vld [vmem:[#allocation6 + $0x470] sm:$0xff]
    %v197 = vld [vmem:[#allocation6 + $0x478] sm:$0xff]
    %v198 = vld [vmem:[#allocation6 + $0x480] sm:$0xff]
    %v199 = vld [vmem:[#allocation6 + $0x488] sm:$0xff]
    %v200 = vld [vmem:[#allocation6 + $0x490] sm:$0xff]
    %v201 = vld [vmem:[#allocation6 + $0x498] sm:$0xff]
    %v202 = vld [vmem:[#allocation6 + $0x4a0] sm:$0xff]
    %v203 = vld [vmem:[#allocation6 + $0x4a8] sm:$0xff]
    %v204 = vld [vmem:[#allocation6 + $0x4b0] sm:$0xff]
    %v205 = vld [vmem:[#allocation6 + $0x4b8] sm:$0xff]
    %v206 = vld [vmem:[#allocation6 + $0x4c0] sm:$0xff]
    %v207 = vld [vmem:[#allocation6 + $0x4c8] sm:$0xff]
    %v208 = vld [vmem:[#allocation6 + $0x4d0] sm:$0xff]
    %v209 = vld [vmem:[#allocation6 + $0x4d8] sm:$0xff]
    %v210 = vld [vmem:[#allocation6 + $0x4e0] sm:$0xff]
    %v211 = vld [vmem:[#allocation6 + $0x4e8] sm:$0xff]
    %v212 = vld [vmem:[#allocation6 + $0x4f0] sm:$0xff]
    %v213 = vld [vmem:[#allocation6 + $0x4f8] sm:$0xff]
    %v214 = vld [vmem:[#allocation6 + $0x500] sm:$0xff]
    %v215 = vld [vmem:[#allocation6 + $0x508] sm:$0xff]
    %v216 = vld [vmem:[#allocation6 + $0x510] sm:$0xff]
    %v217 = vld [vmem:[#allocation6 + $0x518] sm:$0xff]
    %v218 = vld [vmem:[#allocation6 + $0x520] sm:$0xff]
    %v219 = vld [vmem:[#allocation6 + $0x528] sm:$0xff]
    %v220 = vld [vmem:[#allocation6 + $0x530] sm:$0xff]
    %v221 = vld [vmem:[#allocation6 + $0x538] sm:$0xff]
    %v222 = vld [vmem:[#allocation6 + $0x540] sm:$0xff]
    %v223 = vld [vmem:[#allocation6 + $0x548] sm:$0xff]
    %v224 = vld [vmem:[#allocation6 + $0x550] sm:$0xff]
    %v225 = vld [vmem:[#allocation6 + $0x558] sm:$0xff]
    %v226 = vld [vmem:[#allocation6 + $0x560] sm:$0xff]
    %v227 = vld [vmem:[#allocation6 + $0x568] sm:$0xff]
    %v228 = vld [vmem:[#allocation6 + $0x570] sm:$0xff]
    %v229 = vld [vmem:[#allocation6 + $0x578] sm:$0xff]
    %v230 = vld [vmem:[#allocation6 + $0x580] sm:$0xff]
    %v231 = vld [vmem:[#allocation6 + $0x588] sm:$0xff]
    %v232 = vld [vmem:[#allocation6 + $0x590] sm:$0xff]
    %v233 = vld [vmem:[#allocation6 + $0x598] sm:$0xff]
    %v234 = vld [vmem:[#allocation6 + $0x5a0] sm:$0xff]
    %v235 = vld [vmem:[#allocation6 + $0x5a8] sm:$0xff]
    %v236 = vld [vmem:[#allocation6 + $0x5b0] sm:$0xff]
    %v237 = vld [vmem:[#allocation6 + $0x5b8] sm:$0xff]
    %v238 = vld [vmem:[#allocation6 + $0x5c0] sm:$0xff]
    %v239 = vld [vmem:[#allocation6 + $0x5c8] sm:$0xff]
    %v240 = vld [vmem:[#allocation6 + $0x5d0] sm:$0xff]
    %v241 = vld [vmem:[#allocation6 + $0x5d8] sm:$0xff]
    %v242 = vld [vmem:[#allocation6 + $0x5e0] sm:$0xff]
    %v243 = vld [vmem:[#allocation6 + $0x5e8] sm:$0xff]
    %v244 = vld [vmem:[#allocation6 + $0x5f0] sm:$0xff]
    %v245 = vld [vmem:[#allocation6 + $0x5f8] sm:$0xff]
    %s246 = sld [smem:[#allocation2]]
    %v247 = vstv %s246
    %248 = vmatprep.subr.mxu0 0.0
    %249 = vmatpush1.msra.mxu0 %v54
    %250 = vmatprep.subr.mxu0 0.0
    %251 = vmatpush1.msra.mxu0 %v55
    %252 = vmatprep.subr.mxu0 0.0
    %253 = vmatpush1.msra.mxu0 %v56
    %254 = vmatprep.subr.mxu0 0.0
    %255 = vmatpush1.msra.mxu0 %v57
    %256 = vmatprep.subr.mxu0 0.0
    %257 = vmatpush1.msra.mxu0 %v58
    %258 = vmatprep.subr.mxu0 0.0
    %259 = vmatpush1.msra.mxu0 %v59
    %260 = vmatprep.subr.mxu0 0.0
    %261 = vmatpush1.msra.mxu0 %v60
    %262 = vmatprep.subr.mxu0 0.0
    %263 = vmatpush1.msra.mxu0 %v61
    %264 = vmatprep.subr.mxu0 0.0
    %265 = vmatpush1.msra.mxu0 %v62
    %266 = vmatprep.subr.mxu0 0.0
    %267 = vmatpush1.msra.mxu0 %v63
    %268 = vmatprep.subr.mxu0 0.0
    %269 = vmatpush1.msra.mxu0 %v64
    %270 = vmatprep.subr.mxu0 0.0
    %271 = vmatpush1.msra.mxu0 %v65
    %272 = vmatprep.subr.mxu0 0.0
    %273 = vmatpush1.msra.mxu0 %v66
    %274 = vmatprep.subr.mxu0 0.0
    %275 = vmatpush1.msra.mxu0 %v67
    %276 = vmatprep.subr.mxu0 0.0
    %277 = vmatpush1.msra.mxu0 %v68
    %278 = vmatprep.subr.mxu0 0.0
    %279 = vmatpush1.msra.mxu0 %v69
    %280 = vmatprep.subr.mxu0 0.0
    %281 = vmatpush1.msra.mxu0 %v70
    %282 = vmatprep.subr.mxu0 0.0
    %283 = vmatpush1.msra.mxu0 %v71
    %284 = vmatprep.subr.mxu0 0.0
    %285 = vmatpush1.msra.mxu0 %v72
    %286 = vmatprep.subr.mxu0 0.0
    %287 = vmatpush1.msra.mxu0 %v73
    %288 = vmatprep.subr.mxu0 0.0
    %289 = vmatpush1.msra.mxu0 %v74
    %290 = vmatprep.subr.mxu0 0.0
    %291 = vmatpush1.msra.mxu0 %v75
    %292 = vmatprep.subr.mxu0 0.0
    %293 = vmatpush1.msra.mxu0 %v76
    %294 = vmatprep.subr.mxu0 0.0
    %295 = vmatpush1.msra.mxu0 %v77
    %296 = vmatprep.subr.mxu0 0.0
    %297 = vmatpush1.msra.mxu0 %v78
    %298 = vmatprep.subr.mxu0 0.0
    %299 = vmatpush1.msra.mxu0 %v79
    %300 = vmatprep.subr.mxu0 0.0
    %301 = vmatpush1.msra.mxu0 %v80
    %302 = vmatprep.subr.mxu0 0.0
    %303 = vmatpush1.msra.mxu0 %v81
    %304 = vmatprep.subr.mxu0 0.0
    %305 = vmatpush1.msra.mxu0 %v82
    %306 = vmatprep.subr.mxu0 0.0
    %307 = vmatpush1.msra.mxu0 %v83
    %308 = vmatprep.subr.mxu0 0.0
    %309 = vmatpush1.msra.mxu0 %v84
    %310 = vmatprep.subr.mxu0 0.0
    %311 = vmatpush1.msra.mxu0 %v85
    %312 = vmatprep.mubr.f32.mxu0 %v43
    %313 = vmatmul.mubr.f32.gmra.mrb[0].mxu0 %v42
    %v314 = vpop.f32.mrb[0].mxu0
    %v315 = vadd.f32 %v247, %v314
    %v316 = vpop.f32.mrb[0].mxu0
    %317 = vdwg.mxu0
    %318 = vmatprep.subr.mxu0 0.0
    %319 = vmatpush1.msra.mxu0 %v86
    %320 = vmatprep.subr.mxu0 0.0
    %321 = vmatpush1.msra.mxu0 %v87
    %322 = vmatprep.subr.mxu0 0.0
    %323 = vmatpush1.msra.mxu0 %v88
    %324 = vmatprep.subr.mxu0 0.0
    %325 = vmatpush1.msra.mxu0 %v89
    %326 = vmatprep.subr.mxu0 0.0
    %327 = vmatpush1.msra.mxu0 %v90
    %328 = vmatprep.subr.mxu0 0.0
    %329 = vmatpush1.msra.mxu0 %v91
    %330 = vmatprep.subr.mxu0 0.0
    %331 = vmatpush1.msra.mxu0 %v92
    %332 = vmatprep.subr.mxu0 0.0
    %333 = vmatpush1.msra.mxu0 %v93
    %334 = vmatprep.subr.mxu0 0.0
    %335 = vmatpush1.msra.mxu0 %v94
    %336 = vmatprep.subr.mxu0 0.0
    %337 = vmatpush1.msra.mxu0 %v95
    %338 = vmatprep.subr.mxu0 0.0
    %339 = vmatpush1.msra.mxu0 %v96
    %340 = vmatprep.subr.mxu0 0.0
    %341 = vmatpush1.msra.mxu0 %v97
    %342 = vmatprep.subr.mxu0 0.0
    %343 = vmatpush1.msra.mxu0 %v98
    %344 = vmatprep.subr.mxu0 0.0
    %345 = vmatpush1.msra.mxu0 %v99
    %346 = vmatprep.subr.mxu0 0.0
    %347 = vmatpush1.msra.mxu0 %v100
    %348 = vmatprep.subr.mxu0 0.0
    %349 = vmatpush1.msra.mxu0 %v101
    %350 = vmatprep.subr.mxu0 0.0
    %351 = vmatpush1.msra.mxu0 %v102
    %352 = vmatprep.subr.mxu0 0.0
    %353 = vmatpush1.msra.mxu0 %v103
    %354 = vmatprep.subr.mxu0 0.0
    %355 = vmatpush1.msra.mxu0 %v104
    %356 = vmatprep.subr.mxu0 0.0
    %357 = vmatpush1.msra.mxu0 %v105
    %358 = vmatprep.subr.mxu0 0.0
    %359 = vmatpush1.msra.mxu0 %v106
    %360 = vmatprep.subr.mxu0 0.0
    %361 = vmatpush1.msra.mxu0 %v107
    %362 = vmatprep.subr.mxu0 0.0
    %363 = vmatpush1.msra.mxu0 %v108
    %364 = vmatprep.subr.mxu0 0.0
    %365 = vmatpush1.msra.mxu0 %v109
    %366 = vmatprep.subr.mxu0 0.0
    %367 = vmatpush1.msra.mxu0 %v110
    %368 = vmatprep.subr.mxu0 0.0
    %369 = vmatpush1.msra.mxu0 %v111
    %370 = vmatprep.subr.mxu0 0.0
    %371 = vmatpush1.msra.mxu0 %v112
    %372 = vmatprep.subr.mxu0 0.0
    %373 = vmatpush1.msra.mxu0 %v113
    %374 = vmatprep.subr.mxu0 0.0
    %375 = vmatpush1.msra.mxu0 %v114
    %376 = vmatprep.subr.mxu0 0.0
    %377 = vmatpush1.msra.mxu0 %v115
    %378 = vmatprep.subr.mxu0 0.0
    %379 = vmatpush1.msra.mxu0 %v116
    %380 = vmatprep.subr.mxu0 0.0
    %381 = vmatpush1.msra.mxu0 %v117
    %382 = vmatprep.mubr.f32.mxu0 %v45
    %383 = vmatmul.mubr.f32.gmra.mrb[0].mxu0 %v44
    %v384 = vpop.f32.mrb[0].mxu0
    %v385 = vadd.f32 %v315, %v384
    %v386 = vpop.f32.mrb[0].mxu0
    %387 = vdwg.mxu0
    %388 = vmatprep.subr.mxu0 0.0
    %389 = vmatpush1.msra.mxu0 %v118
    %390 = vmatprep.subr.mxu0 0.0
    %391 = vmatpush1.msra.mxu0 %v119
    %392 = vmatprep.subr.mxu0 0.0
    %393 = vmatpush1.msra.mxu0 %v120
    %394 = vmatprep.subr.mxu0 0.0
    %395 = vmatpush1.msra.mxu0 %v121
    %396 = vmatprep.subr.mxu0 0.0
    %397 = vmatpush1.msra.mxu0 %v122
    %398 = vmatprep.subr.mxu0 0.0
    %399 = vmatpush1.msra.mxu0 %v123
    %400 = vmatprep.subr.mxu0 0.0
    %401 = vmatpush1.msra.mxu0 %v124
    %402 = vmatprep.subr.mxu0 0.0
    %403 = vmatpush1.msra.mxu0 %v125
    %404 = vmatprep.subr.mxu0 0.0
    %405 = vmatpush1.msra.mxu0 %v126
    %406 = vmatprep.subr.mxu0 0.0
    %407 = vmatpush1.msra.mxu0 %v127
    %408 = vmatprep.subr.mxu0 0.0
    %409 = vmatpush1.msra.mxu0 %v128
    %410 = vmatprep.subr.mxu0 0.0
    %411 = vmatpush1.msra.mxu0 %v129
    %412 = vmatprep.subr.mxu0 0.0
    %413 = vmatpush1.msra.mxu0 %v130
    %414 = vmatprep.subr.mxu0 0.0
    %415 = vmatpush1.msra.mxu0 %v131
    %416 = vmatprep.subr.mxu0 0.0
    %417 = vmatpush1.msra.mxu0 %v132
    %418 = vmatprep.subr.mxu0 0.0
    %419 = vmatpush1.msra.mxu0 %v133
    %420 = vmatprep.subr.mxu0 0.0
    %421 = vmatpush1.msra.mxu0 %v134
    %422 = vmatprep.subr.mxu0 0.0
    %423 = vmatpush1.msra.mxu0 %v135
    %424 = vmatprep.subr.mxu0 0.0
    %425 = vmatpush1.msra.mxu0 %v136
    %426 = vmatprep.subr.mxu0 0.0
    %427 = vmatpush1.msra.mxu0 %v137
    %428 = vmatprep.subr.mxu0 0.0
    %429 = vmatpush1.msra.mxu0 %v138
    %430 = vmatprep.subr.mxu0 0.0
    %431 = vmatpush1.msra.mxu0 %v139
    %432 = vmatprep.subr.mxu0 0.0
    %433 = vmatpush1.msra.mxu0 %v140
    %434 = vmatprep.subr.mxu0 0.0
    %435 = vmatpush1.msra.mxu0 %v141
    %436 = vmatprep.subr.mxu0 0.0
    %437 = vmatpush1.msra.mxu0 %v142
    %438 = vmatprep.subr.mxu0 0.0
    %439 = vmatpush1.msra.mxu0 %v143
    %440 = vmatprep.subr.mxu0 0.0
    %441 = vmatpush1.msra.mxu0 %v144
    %442 = vmatprep.subr.mxu0 0.0
    %443 = vmatpush1.msra.mxu0 %v145
    %444 = vmatprep.subr.mxu0 0.0
    %445 = vmatpush1.msra.mxu0 %v146
    %446 = vmatprep.subr.mxu0 0.0
    %447 = vmatpush1.msra.mxu0 %v147
    %448 = vmatprep.subr.mxu0 0.0
    %449 = vmatpush1.msra.mxu0 %v148
    %450 = vmatprep.subr.mxu0 0.0
    %451 = vmatpush1.msra.mxu0 %v149
    %452 = vmatprep.mubr.f32.mxu0 %v47
    %453 = vmatmul.mubr.f32.gmra.mrb[0].mxu0 %v46
    %v454 = vpop.f32.mrb[0].mxu0
    %v455 = vadd.f32 %v385, %v454
    %v456 = vpop.f32.mrb[0].mxu0
    %457 = vdwg.mxu0
    %458 = vmatprep.subr.mxu0 0.0
    %459 = vmatpush1.msra.mxu0 %v150
    %460 = vmatprep.subr.mxu0 0.0
    %461 = vmatpush1.msra.mxu0 %v151
    %462 = vmatprep.subr.mxu0 0.0
    %463 = vmatpush1.msra.mxu0 %v152
    %464 = vmatprep.subr.mxu0 0.0
    %465 = vmatpush1.msra.mxu0 %v153
    %466 = vmatprep.subr.mxu0 0.0
    %467 = vmatpush1.msra.mxu0 %v154
    %468 = vmatprep.subr.mxu0 0.0
    %469 = vmatpush1.msra.mxu0 %v155
    %470 = vmatprep.subr.mxu0 0.0
    %471 = vmatpush1.msra.mxu0 %v156
    %472 = vmatprep.subr.mxu0 0.0
    %473 = vmatpush1.msra.mxu0 %v157
    %474 = vmatprep.subr.mxu0 0.0
    %475 = vmatpush1.msra.mxu0 %v158
    %476 = vmatprep.subr.mxu0 0.0
    %477 = vmatpush1.msra.mxu0 %v159
    %478 = vmatprep.subr.mxu0 0.0
    %479 = vmatpush1.msra.mxu0 %v160
    %480 = vmatprep.subr.mxu0 0.0
    %481 = vmatpush1.msra.mxu0 %v161
    %482 = vmatprep.subr.mxu0 0.0
    %483 = vmatpush1.msra.mxu0 %v162
    %484 = vmatprep.subr.mxu0 0.0
    %485 = vmatpush1.msra.mxu0 %v163
    %486 = vmatprep.subr.mxu0 0.0
    %487 = vmatpush1.msra.mxu0 %v164
    %488 = vmatprep.subr.mxu0 0.0
    %489 = vmatpush1.msra.mxu0 %v165
    %490 = vmatprep.subr.mxu0 0.0
    %491 = vmatpush1.msra.mxu0 %v166
    %492 = vmatprep.subr.mxu0 0.0
    %493 = vmatpush1.msra.mxu0 %v167
    %494 = vmatprep.subr.mxu0 0.0
    %495 = vmatpush1.msra.mxu0 %v168
    %496 = vmatprep.subr.mxu0 0.0
    %497 = vmatpush1.msra.mxu0 %v169
    %498 = vmatprep.subr.mxu0 0.0
    %499 = vmatpush1.msra.mxu0 %v170
    %500 = vmatprep.subr.mxu0 0.0
    %501 = vmatpush1.msra.mxu0 %v171
    %502 = vmatprep.subr.mxu0 0.0
    %503 = vmatpush1.msra.mxu0 %v172
    %504 = vmatprep.subr.mxu0 0.0
    %505 = vmatpush1.msra.mxu0 %v173
    %506 = vmatprep.subr.mxu0 0.0
    %507 = vmatpush1.msra.mxu0 %v174
    %508 = vmatprep.subr.mxu0 0.0
    %509 = vmatpush1.msra.mxu0 %v175
    %510 = vmatprep.subr.mxu0 0.0
    %511 = vmatpush1.msra.mxu0 %v176
    %512 = vmatprep.subr.mxu0 0.0
    %513 = vmatpush1.msra.mxu0 %v177
    %514 = vmatprep.subr.mxu0 0.0
    %515 = vmatpush1.msra.mxu0 %v178
    %516 = vmatprep.subr.mxu0 0.0
    %517 = vmatpush1.msra.mxu0 %v179
    %518 = vmatprep.subr.mxu0 0.0
    %519 = vmatpush1.msra.mxu0 %v180
    %520 = vmatprep.subr.mxu0 0.0
    %521 = vmatpush1.msra.mxu0 %v181
    %522 = vmatprep.mubr.f32.mxu0 %v49
    %523 = vmatmul.mubr.f32.gmra.mrb[0].mxu0 %v48
    %v524 = vpop.f32.mrb[0].mxu0
    %v525 = vadd.f32 %v455, %v524
    %v526 = vpop.f32.mrb[0].mxu0
    %527 = vdwg.mxu0
    %528 = vmatprep.subr.mxu0 0.0
    %529 = vmatpush1.msra.mxu0 %v182
    %530 = vmatprep.subr.mxu0 0.0
    %531 = vmatpush1.msra.mxu0 %v183
    %532 = vmatprep.subr.mxu0 0.0
    %533 = vmatpush1.msra.mxu0 %v184
    %534 = vmatprep.subr.mxu0 0.0
    %535 = vmatpush1.msra.mxu0 %v185
    %536 = vmatprep.subr.mxu0 0.0
    %537 = vmatpush1.msra.mxu0 %v186
    %538 = vmatprep.subr.mxu0 0.0
    %539 = vmatpush1.msra.mxu0 %v187
    %540 = vmatprep.subr.mxu0 0.0
    %541 = vmatpush1.msra.mxu0 %v188
    %542 = vmatprep.subr.mxu0 0.0
    %543 = vmatpush1.msra.mxu0 %v189
    %544 = vmatprep.subr.mxu0 0.0
    %545 = vmatpush1.msra.mxu0 %v190
    %546 = vmatprep.subr.mxu0 0.0
    %547 = vmatpush1.msra.mxu0 %v191
    %548 = vmatprep.subr.mxu0 0.0
    %549 = vmatpush1.msra.mxu0 %v192
    %550 = vmatprep.subr.mxu0 0.0
    %551 = vmatpush1.msra.mxu0 %v193
    %552 = vmatprep.subr.mxu0 0.0
    %553 = vmatpush1.msra.mxu0 %v194
    %554 = vmatprep.subr.mxu0 0.0
    %555 = vmatpush1.msra.mxu0 %v195
    %556 = vmatprep.subr.mxu0 0.0
    %557 = vmatpush1.msra.mxu0 %v196
    %558 = vmatprep.subr.mxu0 0.0
    %559 = vmatpush1.msra.mxu0 %v197
    %560 = vmatprep.subr.mxu0 0.0
    %561 = vmatpush1.msra.mxu0 %v198
    %562 = vmatprep.subr.mxu0 0.0
    %563 = vmatpush1.msra.mxu0 %v199
    %564 = vmatprep.subr.mxu0 0.0
    %565 = vmatpush1.msra.mxu0 %v200
    %566 = vmatprep.subr.mxu0 0.0
    %567 = vmatpush1.msra.mxu0 %v201
    %568 = vmatprep.subr.mxu0 0.0
    %569 = vmatpush1.msra.mxu0 %v202
    %570 = vmatprep.subr.mxu0 0.0
    %571 = vmatpush1.msra.mxu0 %v203
    %572 = vmatprep.subr.mxu0 0.0
    %573 = vmatpush1.msra.mxu0 %v204
    %574 = vmatprep.subr.mxu0 0.0
    %575 = vmatpush1.msra.mxu0 %v205
    %576 = vmatprep.subr.mxu0 0.0
    %577 = vmatpush1.msra.mxu0 %v206
    %578 = vmatprep.subr.mxu0 0.0
    %579 = vmatpush1.msra.mxu0 %v207
    %580 = vmatprep.subr.mxu0 0.0
    %581 = vmatpush1.msra.mxu0 %v208
    %582 = vmatprep.subr.mxu0 0.0
    %583 = vmatpush1.msra.mxu0 %v209
    %584 = vmatprep.subr.mxu0 0.0
    %585 = vmatpush1.msra.mxu0 %v210
    %586 = vmatprep.subr.mxu0 0.0
    %587 = vmatpush1.msra.mxu0 %v211
    %588 = vmatprep.subr.mxu0 0.0
    %589 = vmatpush1.msra.mxu0 %v212
    %590 = vmatprep.subr.mxu0 0.0
    %591 = vmatpush1.msra.mxu0 %v213
    %592 = vmatprep.mubr.f32.mxu0 %v51
    %593 = vmatmul.mubr.f32.gmra.mrb[0].mxu0 %v50
    %v594 = vpop.f32.mrb[0].mxu0
    %v595 = vadd.f32 %v525, %v594
    %v596 = vpop.f32.mrb[0].mxu0
    %597 = vdwg.mxu0
    %598 = vmatprep.subr.mxu0 0.0
    %599 = vmatpush1.msra.mxu0 %v214
    %600 = vmatprep.subr.mxu0 0.0
    %601 = vmatpush1.msra.mxu0 %v215
    %602 = vmatprep.subr.mxu0 0.0
    %603 = vmatpush1.msra.mxu0 %v216
    %604 = vmatprep.subr.mxu0 0.0
    %605 = vmatpush1.msra.mxu0 %v217
    %606 = vmatprep.subr.mxu0 0.0
    %607 = vmatpush1.msra.mxu0 %v218
    %608 = vmatprep.subr.mxu0 0.0
    %609 = vmatpush1.msra.mxu0 %v219
    %610 = vmatprep.subr.mxu0 0.0
    %611 = vmatpush1.msra.mxu0 %v220
    %612 = vmatprep.subr.mxu0 0.0
    %613 = vmatpush1.msra.mxu0 %v221
    %614 = vmatprep.subr.mxu0 0.0
    %615 = vmatpush1.msra.mxu0 %v222
    %616 = vmatprep.subr.mxu0 0.0
    %617 = vmatpush1.msra.mxu0 %v223
    %618 = vmatprep.subr.mxu0 0.0
    %619 = vmatpush1.msra.mxu0 %v224
    %620 = vmatprep.subr.mxu0 0.0
    %621 = vmatpush1.msra.mxu0 %v225
    %622 = vmatprep.subr.mxu0 0.0
    %623 = vmatpush1.msra.mxu0 %v226
    %624 = vmatprep.subr.mxu0 0.0
    %625 = vmatpush1.msra.mxu0 %v227
    %626 = vmatprep.subr.mxu0 0.0
    %627 = vmatpush1.msra.mxu0 %v228
    %628 = vmatprep.subr.mxu0 0.0
    %629 = vmatpush1.msra.mxu0 %v229
    %630 = vmatprep.subr.mxu0 0.0
    %631 = vmatpush1.msra.mxu0 %v230
    %632 = vmatprep.subr.mxu0 0.0
    %633 = vmatpush1.msra.mxu0 %v231
    %634 = vmatprep.subr.mxu0 0.0
    %635 = vmatpush1.msra.mxu0 %v232
    %636 = vmatprep.subr.mxu0 0.0
    %637 = vmatpush1.msra.mxu0 %v233
    %638 = vmatprep.subr.mxu0 0.0
    %639 = vmatpush1.msra.mxu0 %v234
    %640 = vmatprep.subr.mxu0 0.0
    %641 = vmatpush1.msra.mxu0 %v235
    %642 = vmatprep.subr.mxu0 0.0
    %643 = vmatpush1.msra.mxu0 %v236
    %644 = vmatprep.subr.mxu0 0.0
    %645 = vmatpush1.msra.mxu0 %v237
    %646 = vmatprep.subr.mxu0 0.0
    %647 = vmatpush1.msra.mxu0 %v238
    %648 = vmatprep.subr.mxu0 0.0
    %649 = vmatpush1.msra.mxu0 %v239
    %650 = vmatprep.subr.mxu0 0.0
    %651 = vmatpush1.msra.mxu0 %v240
    %652 = vmatprep.subr.mxu0 0.0
    %653 = vmatpush1.msra.mxu0 %v241
    %654 = vmatprep.subr.mxu0 0.0
    %655 = vmatpush1.msra.mxu0 %v242
    %656 = vmatprep.subr.mxu0 0.0
    %657 = vmatpush1.msra.mxu0 %v243
    %658 = vmatprep.subr.mxu0 0.0
    %659 = vmatpush1.msra.mxu0 %v244
    %660 = vmatprep.subr.mxu0 0.0
    %661 = vmatpush1.msra.mxu0 %v245
    %662 = vmatprep.mubr.f32.mxu0 %v53
    %663 = vmatmul.mubr.f32.gmra.mrb[0].mxu0 %v52
    %v664 = vpop.f32.mrb[0].mxu0
    %v665 = vadd.f32 %v595, %v664
    %v666 = vpop.f32.mrb[0].mxu0
    %667 = vdwg.mxu0
    %vm668 = vcmp.ge.f32.partialorder %v665, 0.0
    %v669 = vmul.f32 %v665, 0.01
    %v670 = vsel %vm668, %v665, %v669
    %v671 = vand.u32 2147483647, %v670
    %v672 = vsub.f32 0.0, %v671
    %v673 = vmul.f32 %v672, 1.442695
    %v674 = vpow.pop %v673
    %v675 = vadd.f32 %v674, 1.0
    %v676 = vrcp.pop %v675
    %vm677 = vcmp.ge.f32.partialorder %v670, 0.0
    %v678 = vmul.f32 %v674, %v676
    %v679 = vsel %vm677, %v676, %v678
    %680 = vst [vmem:[#allocation8] sm:$0xff] %v679
    // Predicated region
    $region22: #{tpu_custom_call.1} parent=1 // pred_check
      _
    $region23: #{tpu_custom_call.1} parent=1 // pred_check_branch
      %682 = sbr.rel (0) target = $region25
    $region24: #{tpu_custom_call.1} parent=1 // pred_region
      %s684 = ssub.s32 128, 128
      %685 = vsyncadd [#allocation5], %s684
      %s687 = sshll.u32 [#allocation8], 4
      %s688 = int_to_ptr.vmem [resolvable:$true] %s687
      %690 = dma.vmem_to_hbm [thread:$0]  %s688, 128, %s3, [#allocation5]
    $region25: #{tpu_custom_call.1} parent=1 // pred_fallthru
      _
    // Predicated region
    $region26: #{tpu_custom_call.1} parent=1 // pred_check
      _
    $region27: #{tpu_custom_call.1} parent=1 // pred_check_branch
      %692 = sbr.rel (0) target = $region29
    $region28: #{tpu_custom_call.1} parent=1 // pred_region
      %693 = dma.done [#allocation5], 128
    $region29: #{tpu_custom_call.1} parent=1 // pred_fallthru
      _
    %694 = vsyncpa [#allocation4], 1
    %695 = vsyncpa [#allocation7], 1
    %696 = vsyncpa [#allocation5], 1

</llo_original>
